<compile_context>
chip_gen: v7x
topology: tpu7x:2x2x1
jax: 0.10.0
libtpu: 0.0.40
codegen_flags: <defaults>
</compile_context>

<pallas_src>
import jax
import jax.numpy as jnp
from jax import lax
from jax.experimental import pallas as pl
from jax.experimental.pallas import tpu as pltpu

_EPS = 1e-8       # ThreeClassDice epsilon
_LANES = 128


def _make_dice_kernel(num_classes, chunk_rows, n_chunks, sub, num_row_tiles,
                      guard_empty):
    """Builds the kernel with static shape info baked in via closure."""

    def fold(v):
        # (chunk_rows, 128) -> (sub, 128) using only elementwise tile adds
        # (a natural re-view of the (8,128) tiling; no XLU).
        if chunk_rows % 8 == 0 and chunk_rows > 8:
            return jnp.sum(v.reshape(chunk_rows // 8, 8, _LANES), axis=0)
        return v

    def kernel(thresh_ref, x_ref, t_ref, w_ref, out_ref):
        rr = pl.program_id(2)

        @pl.when(rr == 0)
        def _init():
            out_ref[...] = jnp.zeros_like(out_ref)

        thresh = thresh_ref[0]

        def tile_counts(rows, carry):
            # `rows` is either slice(None) (whole tile) or a pl.ds sub-chunk.
            w = w_ref[rows, :].astype(jnp.float32)            # (chunk, 128)
            region = w > thresh                               # bool; sentinel rows -> False

            # Softmax pieces, plane-wise: pure elementwise VPU/EUP on dense tiles.
            planes = [x_ref[c, rows, :].astype(jnp.float32)
                      for c in range(num_classes)]
            m = planes[0]
            for c in range(1, num_classes):
                m = jnp.maximum(m, planes[c])
            exps = [jnp.exp(p - m) for p in planes]
            sum_e = exps[0]
            for c in range(1, num_classes):
                sum_e = sum_e + exps[c]
            half_sum = 0.5 * sum_e        # probs_c > 0.5  <=>  e_c > 0.5*sum_e

            new = []
            for c in range(2):            # only classes 0 (nuclei) and 1 (edge)
                pred_f = jnp.logical_and(
                    region, exps[c] > half_sum).astype(jnp.float32)
                targ_f = jnp.logical_and(
                    region, t_ref[c, rows, :] > 0).astype(jnp.float32)
                inter_f = pred_f * targ_f          # product of cast masks
                base = 3 * c
                new.append(carry[base + 0] + fold(inter_f))
                new.append(carry[base + 1] + fold(pred_f))
                new.append(carry[base + 2] + fold(targ_f))
            return tuple(new)

        def compute():
            zeros = tuple(jnp.zeros((sub, _LANES), jnp.float32)
                          for _ in range(6))
            if n_chunks == 1:
                acc = tile_counts(slice(None), zeros)
            else:
                def body(ci, carry):
                    row0 = pl.multiple_of(ci * chunk_rows, chunk_rows)
                    return tile_counts(pl.ds(row0, chunk_rows), carry)
                acc = lax.fori_loop(0, n_chunks, body, zeros)
            for k in range(6):
                out_ref[k, :, :] += acc[k]

        if guard_empty:
            # Last step of the second split may be past the real tile count.
            g = pl.program_id(1) * pl.num_programs(2) + rr
            pl.when(g < num_row_tiles)(compute)
        else:
            compute()

    return kernel


def overlap_metric_dice(inputs, targets, weight_map, thresh, *, tile_rows=1024):
    """Pallas TPU implementation of overlapmetricdice.forward.

    Returns (overalldice, nucleidice, edgedice) like the PyTorch module.

    Caller dtype contract (kernel casts in-VMEM): pass bf16 logits and
    int8/bool targets when available to halve HBM traffic; weight_map may be
    any float dtype. thresh must be finite.
    """
    N, C, H, W = inputs.shape
    assert targets.shape[0] == N and targets.shape[2:] == (H, W)
    assert targets.shape[1] >= 2
    hw = H * W
    n_rows = pl.cdiv(hw, _LANES)          # rows of 128 pixels per sample
    ct = targets.shape[1]

    # Zero-copy reshape NCHW -> (N, C, rows, 128) whenever HW % 128 == 0.
    if hw % _LANES == 0:
        x = inputs.reshape(N, C, n_rows, _LANES)
        t = targets.reshape(N, ct, n_rows, _LANES)
    else:
        # TODO(synk): produce H*W as a multiple of 128 upstream (or fuse this pad
        # into the logits/targets producer) to avoid one full HBM copy of x/t.
        pad = n_rows * _LANES - hw
        x = jnp.pad(inputs.reshape(N, C, hw), ((0, 0), (0, 0), (0, pad)))
        x = x.reshape(N, C, n_rows, _LANES)
        t = jnp.pad(targets.reshape(N, ct, hw), ((0, 0), (0, 0), (0, pad)))
        t = t.reshape(N, ct, n_rows, _LANES)

    tr = tile_rows if n_rows >= tile_rows else n_rows       # rows per block
    num_row_tiles = pl.cdiv(n_rows, tr)

    # weight_map: batch dim 1 or N; never materialize the batch broadcast —
    # the BlockSpec index_map handles it for free.
    Nw = weight_map.shape[0]
    assert Nw in (1, N) and weight_map.size == Nw * hw
    wm = weight_map.reshape(Nw, hw)

    # Deterministic sentinel pad of the (small) weight plane over the full
    # grid-covered extent: region=False on every padded / OOB pixel, so x/t
    # garbage in partial edge blocks or the ragged-HW tail never counts.
    total_rows = num_row_tiles * tr
    if total_rows * _LANES != hw:
        if not jnp.issubdtype(wm.dtype, jnp.floating):
            wm = wm.astype(jnp.float32)
        wm = jnp.pad(wm, ((0, 0), (0, total_rows * _LANES - hw)),
                     constant_values=-jnp.inf)
    w = wm.reshape(Nw, total_rows, _LANES)

    # 2-way split of the reduction axis so both v7x TensorCores stay busy even
    # for N == 1 (no effect on single-TC v5e/v6e beyond a trivially small grid).
    n_splits = 2 if num_row_tiles >= 2 else 1
    half_tiles = pl.cdiv(num_row_tiles, n_splits)
    guard_empty = n_splits * half_tiles != num_row_tiles

    # Inner-chunk size bounds VMEM temporaries (full tile if small).
    chunk_rows = 256 if tr % 256 == 0 else tr
    n_chunks = tr // chunk_rows
    sub = 8 if chunk_rows % 8 == 0 else chunk_rows          # accumulator sublanes

    def row_block(s, rrr):
        # Clamp so the (possibly) one empty trailing step re-reads a valid tile;
        # its compute is skipped in-kernel.
        return jnp.minimum(s * half_tiles + rrr, num_row_tiles - 1)

    x_map = lambda n, s, rrr: (n, 0, row_block(s, rrr), 0)
    t_map = lambda n, s, rrr: (n, 0, row_block(s, rrr), 0)
    if Nw == N:
        w_map = lambda n, s, rrr: (n, row_block(s, rrr), 0)
    else:
        w_map = lambda n, s, rrr: (0, row_block(s, rrr), 0)
    out_map = lambda n, s, rrr: (n, s, 0, 0, 0)

    thresh_arr = jnp.asarray(thresh, dtype=jnp.float32).reshape(1)
    kernel = _make_dice_kernel(C, chunk_rows, n_chunks, sub, num_row_tiles,
                               guard_empty)

    partials = pl.pallas_call(
        kernel,
        out_shape=jax.ShapeDtypeStruct((N, n_splits, 6, sub, _LANES),
                                       jnp.float32),
        grid_spec=pltpu.PrefetchScalarGridSpec(
            num_scalar_prefetch=0,
            grid=(N, n_splits, half_tiles),
            in_specs=[
                pl.BlockSpec(memory_space=pltpu.SMEM),            # thresh (scalar)
                pl.BlockSpec((None, C, tr, _LANES), x_map),       # logits
                pl.BlockSpec((None, 2, tr, _LANES), t_map),       # targets: only ch 0,1 DMA'd
                pl.BlockSpec((None, tr, _LANES), w_map),          # weight map
            ],
            out_specs=pl.BlockSpec((None, None, 6, sub, _LANES), out_map),
        ),
        compiler_params=pltpu.CompilerParams(
            dimension_semantics=("parallel", "parallel", "arbitrary")),
    )(thresh_arr, x, t, w)

    # Tiny final reduction + dice math in plain JAX.
    sums = jnp.sum(partials, axis=(0, 1, 3, 4))   # (6,): [I0,P0,T0, I1,P1,T1]
    eps = jnp.float32(_EPS)
    d0 = (2.0 * sums[0] + eps) / (sums[1] + sums[2] + eps)   # nuclei (class 0)
    d1 = (2.0 * sums[3] + eps) / (sums[4] + sums[5] + eps)   # edge   (class 1)
    overall = 0.5 * (d0 + d1)                                # mode 'ne'
    return overall, d0, d1


def _reference(inputs, targets, weight_map, thresh):
    """Pure-JAX transcription of the PyTorch forward, for verification."""
    region = (weight_map > thresh).astype(jnp.float32)
    probs = jax.nn.softmax(inputs.astype(jnp.float32), axis=1)
    op = region * probs
    ot = region * targets.astype(jnp.float32)

    def dice(c):
        pred = (op[:, c] > 0.5).astype(jnp.float32)
        targ = (ot[:, c] > 0.0).astype(jnp.float32)
        inter = jnp.sum(pred * targ)
        union = jnp.sum(pred) + jnp.sum(targ)
        return (2.0 * inter + _EPS) / (union + _EPS)

    d0, d1 = dice(0), dice(1)
    return 0.5 * (d0 + d1), d0, d1


if __name__ == "__main__":
    base = jax.random.PRNGKey(0)
    C = 3
    thresh = 0.5
    cases = [
        # (N, H, W, tile_rows, weight_batch)
        (2, 16, 16, 1024, 1),    # basic, HW % 128 == 0, shared weight map (no broadcast copy)
        (2, 24, 24, 1024, 2),    # ragged HW -> sentinel-padded weight plane
        (1, 256, 256, 512, 1),   # chunked inner fori_loop (n_chunks = 2)
        (1, 96, 96, 32, 1),      # 2-way split + empty-step guard + partial edge tiles
    ]
    for idx, (N, H, W, trows, wb) in enumerate(cases):
        k1, k2, k3 = jax.random.split(jax.random.fold_in(base, idx), 3)
        inputs = jax.random.normal(k1, (N, C, H, W), dtype=jnp.float32)
        targets = (jax.random.uniform(k2, (N, C, H, W)) > 0.5).astype(jnp.float32)
        weight_map = jax.random.uniform(k3, (wb, 1, H, W), dtype=jnp.float32)

        out = overlap_metric_dice(inputs, targets, weight_map, thresh,
                                  tile_rows=trows)
        out = jax.block_until_ready(out)

        ref = _reference(inputs, targets, weight_map, thresh)
        for a, b in zip(out, ref):
            assert abs(float(a) - float(b)) < 1e-5, (idx, float(a), float(b))

    print("KERNEL_OK")
</pallas_src>

<mosaic_0001>
module attributes {stable_mosaic.version = 11 : i64} {
  func.func @kernel(%arg0: i32, %arg1: i32, %arg2: i32, %arg3: memref<1xf32, #tpu.memory_space<smem>>, %arg4: memref<1x3x2x128xf32, #tpu.memory_space<vmem>>, %arg5: memref<1x2x2x128xf32, #tpu.memory_space<vmem>>, %arg6: memref<1x2x128xf32, #tpu.memory_space<vmem>>, %arg7: memref<1x1x6x2x128xf32, #tpu.memory_space<vmem>>) attributes {dimension_semantics = [#tpu.dimension_semantics<parallel>, #tpu.dimension_semantics<parallel>, #tpu.dimension_semantics<arbitrary>], iteration_bounds = array<i64: 2, 1, 1>, scalar_prefetch = 0 : i64, scratch_operands = 0 : i64, tpu.core_type = #tpu.core_type<tc>, window_params = [{transform_indices = @transform_0, window_bounds = array<i64: 1>}, {transform_indices = @transform_1, window_bounds = array<i64: 1, 3, 2, 128>}, {transform_indices = @transform_2, window_bounds = array<i64: 1, 2, 2, 128>}, {transform_indices = @transform_3, window_bounds = array<i64: 1, 2, 128>}, {transform_indices = @transform_4, window_bounds = array<i64: 1, 1, 6, 2, 128>}]} {
    %c0_i32 = arith.constant 0 : i32
    %0 = arith.cmpi eq, %arg2, %c0_i32 : i32
    %1 = arith.extui %0 : i1 to i32
    %c0_i32_0 = arith.constant 0 : i32
    %2 = arith.cmpi ne, %1, %c0_i32_0 : i32
    scf.if %2 {
      %cst_87 = arith.constant 0.000000e+00 : f32
      %98 = vector.broadcast %cst_87 : f32 to vector<6x2x128xf32>
      %c0_88 = arith.constant 0 : index
      %c0_89 = arith.constant 0 : index
      %c0_90 = arith.constant 0 : index
      %c0_91 = arith.constant 0 : index
      %c0_92 = arith.constant 0 : index
      %99 = vector.load %arg7[%c0_88, %c0_89, %c0_90, %c0_91, %c0_92] : memref<1x1x6x2x128xf32, #tpu.memory_space<vmem>>, vector<1x1x6x2x128xf32>
      %100 = vector.shape_cast %99 : vector<1x1x6x2x128xf32> to vector<6x2x128xf32>
      %101 = vector.shape_cast %98 : vector<6x2x128xf32> to vector<1x1x6x2x128xf32>
      tpu.vector_store %arg7[%c0_88, %c0_89, %c0_90, %c0_91, %c0_92], %101 {strides = array<i32>} : memref<1x1x6x2x128xf32, #tpu.memory_space<vmem>>, vector<1x1x6x2x128xf32>,
    } else {
    }
    %c0 = arith.constant 0 : index
    %3 = memref.load %arg3[%c0] : memref<1xf32, #tpu.memory_space<smem>>
    %cst = arith.constant 0.000000e+00 : f32
    %4 = vector.broadcast %cst : f32 to vector<2x128xf32>
    %cst_1 = arith.constant 0.000000e+00 : f32
    %5 = vector.broadcast %cst_1 : f32 to vector<2x128xf32>
    %cst_2 = arith.constant 0.000000e+00 : f32
    %6 = vector.broadcast %cst_2 : f32 to vector<2x128xf32>
    %cst_3 = arith.constant 0.000000e+00 : f32
    %7 = vector.broadcast %cst_3 : f32 to vector<2x128xf32>
    %cst_4 = arith.constant 0.000000e+00 : f32
    %8 = vector.broadcast %cst_4 : f32 to vector<2x128xf32>
    %cst_5 = arith.constant 0.000000e+00 : f32
    %9 = vector.broadcast %cst_5 : f32 to vector<2x128xf32>
    %c0_6 = arith.constant 0 : index
    %c0_7 = arith.constant 0 : index
    %c0_8 = arith.constant 0 : index
    %10 = vector.load %arg6[%c0_6, %c0_7, %c0_8] : memref<1x2x128xf32, #tpu.memory_space<vmem>>, vector<1x2x128xf32>
    %11 = vector.shape_cast %10 : vector<1x2x128xf32> to vector<2x128xf32>
    %12 = vector.broadcast %3 : f32 to vector<2x128xf32>
    %13 = arith.cmpf ogt, %11, %12 : vector<2x128xf32>
    %c0_9 = arith.constant 0 : index
    %c0_10 = arith.constant 0 : index
    %c0_11 = arith.constant 0 : index
    %c0_12 = arith.constant 0 : index
    %14 = vector.load %arg4[%c0_9, %c0_10, %c0_11, %c0_12] : memref<1x3x2x128xf32, #tpu.memory_space<vmem>>, vector<1x1x2x128xf32>
    %15 = vector.shape_cast %14 : vector<1x1x2x128xf32> to vector<2x128xf32>
    %c0_13 = arith.constant 0 : index
    %c1 = arith.constant 1 : index
    %c0_14 = arith.constant 0 : index
    %c0_15 = arith.constant 0 : index
    %16 = vector.load %arg4[%c0_13, %c1, %c0_14, %c0_15] : memref<1x3x2x128xf32, #tpu.memory_space<vmem>>, vector<1x1x2x128xf32>
    %17 = vector.shape_cast %16 : vector<1x1x2x128xf32> to vector<2x128xf32>
    %c0_16 = arith.constant 0 : index
    %c2 = arith.constant 2 : index
    %c0_17 = arith.constant 0 : index
    %c0_18 = arith.constant 0 : index
    %18 = vector.load %arg4[%c0_16, %c2, %c0_17, %c0_18] : memref<1x3x2x128xf32, #tpu.memory_space<vmem>>, vector<1x1x2x128xf32>
    %19 = vector.shape_cast %18 : vector<1x1x2x128xf32> to vector<2x128xf32>
    %20 = arith.maximumf %15, %17 : vector<2x128xf32>
    %21 = arith.maximumf %20, %19 : vector<2x128xf32>
    %22 = arith.subf %15, %21 : vector<2x128xf32>
    %23 = math.exp %22 : vector<2x128xf32>
    %24 = arith.subf %17, %21 : vector<2x128xf32>
    %25 = math.exp %24 : vector<2x128xf32>
    %26 = arith.subf %19, %21 : vector<2x128xf32>
    %27 = math.exp %26 : vector<2x128xf32>
    %28 = arith.addf %23, %25 : vector<2x128xf32>
    %29 = arith.addf %28, %27 : vector<2x128xf32>
    %cst_19 = arith.constant 5.000000e-01 : f32
    %30 = vector.broadcast %cst_19 : f32 to vector<2x128xf32>
    %31 = arith.mulf %30, %29 : vector<2x128xf32>
    %32 = arith.cmpf ogt, %23, %31 : vector<2x128xf32>
    %33 = arith.andi %13, %32 : vector<2x128xi1>
    %34 = arith.extui %33 : vector<2x128xi1> to vector<2x128xi32>
    %35 = arith.sitofp %34 : vector<2x128xi32> to vector<2x128xf32>
    %c0_20 = arith.constant 0 : index
    %c0_21 = arith.constant 0 : index
    %c0_22 = arith.constant 0 : index
    %c0_23 = arith.constant 0 : index
    %36 = vector.load %arg5[%c0_20, %c0_21, %c0_22, %c0_23] : memref<1x2x2x128xf32, #tpu.memory_space<vmem>>, vector<1x1x2x128xf32>
    %37 = vector.shape_cast %36 : vector<1x1x2x128xf32> to vector<2x128xf32>
    %cst_24 = arith.constant 0.000000e+00 : f32
    %38 = vector.broadcast %cst_24 : f32 to vector<2x128xf32>
    %39 = arith.cmpf ogt, %37, %38 : vector<2x128xf32>
    %40 = arith.andi %13, %39 : vector<2x128xi1>
    %41 = arith.extui %40 : vector<2x128xi1> to vector<2x128xi32>
    %42 = arith.sitofp %41 : vector<2x128xi32> to vector<2x128xf32>
    %43 = arith.mulf %35, %42 : vector<2x128xf32>
    %44 = arith.addf %4, %43 : vector<2x128xf32>
    %45 = arith.addf %5, %35 : vector<2x128xf32>
    %46 = arith.addf %6, %42 : vector<2x128xf32>
    %47 = arith.cmpf ogt, %25, %31 : vector<2x128xf32>
    %48 = arith.andi %13, %47 : vector<2x128xi1>
    %49 = arith.extui %48 : vector<2x128xi1> to vector<2x128xi32>
    %50 = arith.sitofp %49 : vector<2x128xi32> to vector<2x128xf32>
    %c0_25 = arith.constant 0 : index
    %c1_26 = arith.constant 1 : index
    %c0_27 = arith.constant 0 : index
    %c0_28 = arith.constant 0 : index
    %51 = vector.load %arg5[%c0_25, %c1_26, %c0_27, %c0_28] : memref<1x2x2x128xf32, #tpu.memory_space<vmem>>, vector<1x1x2x128xf32>
    %52 = vector.shape_cast %51 : vector<1x1x2x128xf32> to vector<2x128xf32>
    %cst_29 = arith.constant 0.000000e+00 : f32
    %53 = vector.broadcast %cst_29 : f32 to vector<2x128xf32>
    %54 = arith.cmpf ogt, %52, %53 : vector<2x128xf32>
    %55 = arith.andi %13, %54 : vector<2x128xi1>
    %56 = arith.extui %55 : vector<2x128xi1> to vector<2x128xi32>
    %57 = arith.sitofp %56 : vector<2x128xi32> to vector<2x128xf32>
    %58 = arith.mulf %50, %57 : vector<2x128xf32>
    %59 = arith.addf %7, %58 : vector<2x128xf32>
    %60 = arith.addf %8, %50 : vector<2x128xf32>
    %61 = arith.addf %9, %57 : vector<2x128xf32>
    %c0_30 = arith.constant 0 : index
    %c0_31 = arith.constant 0 : index
    %c0_32 = arith.constant 0 : index
    %c0_33 = arith.constant 0 : index
    %c0_34 = arith.constant 0 : index
    %62 = vector.load %arg7[%c0_30, %c0_31, %c0_32, %c0_33, %c0_34] : memref<1x1x6x2x128xf32, #tpu.memory_space<vmem>>, vector<1x1x1x2x128xf32>
    %63 = vector.shape_cast %62 : vector<1x1x1x2x128xf32> to vector<2x128xf32>
    %64 = arith.addf %63, %44 : vector<2x128xf32>
    %c0_35 = arith.constant 0 : index
    %c0_36 = arith.constant 0 : index
    %c0_37 = arith.constant 0 : index
    %c0_38 = arith.constant 0 : index
    %c0_39 = arith.constant 0 : index
    %65 = vector.load %arg7[%c0_35, %c0_36, %c0_37, %c0_38, %c0_39] : memref<1x1x6x2x128xf32, #tpu.memory_space<vmem>>, vector<1x1x1x2x128xf32>
    %66 = vector.shape_cast %65 : vector<1x1x1x2x128xf32> to vector<2x128xf32>
    %67 = vector.shape_cast %64 : vector<2x128xf32> to vector<1x1x1x2x128xf32>
    tpu.vector_store %arg7[%c0_35, %c0_36, %c0_37, %c0_38, %c0_39], %67 {strides = array<i32>} : memref<1x1x6x2x128xf32, #tpu.memory_space<vmem>>, vector<1x1x1x2x128xf32>,
    %c0_40 = arith.constant 0 : index
    %c0_41 = arith.constant 0 : index
    %c1_42 = arith.constant 1 : index
    %c0_43 = arith.constant 0 : index
    %c0_44 = arith.constant 0 : index
    %68 = vector.load %arg7[%c0_40, %c0_41, %c1_42, %c0_43, %c0_44] : memref<1x1x6x2x128xf32, #tpu.memory_space<vmem>>, vector<1x1x1x2x128xf32>
    %69 = vector.shape_cast %68 : vector<1x1x1x2x128xf32> to vector<2x128xf32>
    %70 = arith.addf %69, %45 : vector<2x128xf32>
    %c0_45 = arith.constant 0 : index
    %c0_46 = arith.constant 0 : index
    %c1_47 = arith.constant 1 : index
    %c0_48 = arith.constant 0 : index
    %c0_49 = arith.constant 0 : index
    %71 = vector.load %arg7[%c0_45, %c0_46, %c1_47, %c0_48, %c0_49] : memref<1x1x6x2x128xf32, #tpu.memory_space<vmem>>, vector<1x1x1x2x128xf32>
    %72 = vector.shape_cast %71 : vector<1x1x1x2x128xf32> to vector<2x128xf32>
    %73 = vector.shape_cast %70 : vector<2x128xf32> to vector<1x1x1x2x128xf32>
    tpu.vector_store %arg7[%c0_45, %c0_46, %c1_47, %c0_48, %c0_49], %73 {strides = array<i32>} : memref<1x1x6x2x128xf32, #tpu.memory_space<vmem>>, vector<1x1x1x2x128xf32>,
    %c0_50 = arith.constant 0 : index
    %c0_51 = arith.constant 0 : index
    %c2_52 = arith.constant 2 : index
    %c0_53 = arith.constant 0 : index
    %c0_54 = arith.constant 0 : index
    %74 = vector.load %arg7[%c0_50, %c0_51, %c2_52, %c0_53, %c0_54] : memref<1x1x6x2x128xf32, #tpu.memory_space<vmem>>, vector<1x1x1x2x128xf32>
    %75 = vector.shape_cast %74 : vector<1x1x1x2x128xf32> to vector<2x128xf32>
    %76 = arith.addf %75, %46 : vector<2x128xf32>
    %c0_55 = arith.constant 0 : index
    %c0_56 = arith.constant 0 : index
    %c2_57 = arith.constant 2 : index
    %c0_58 = arith.constant 0 : index
    %c0_59 = arith.constant 0 : index
    %77 = vector.load %arg7[%c0_55, %c0_56, %c2_57, %c0_58, %c0_59] : memref<1x1x6x2x128xf32, #tpu.memory_space<vmem>>, vector<1x1x1x2x128xf32>
    %78 = vector.shape_cast %77 : vector<1x1x1x2x128xf32> to vector<2x128xf32>
    %79 = vector.shape_cast %76 : vector<2x128xf32> to vector<1x1x1x2x128xf32>
    tpu.vector_store %arg7[%c0_55, %c0_56, %c2_57, %c0_58, %c0_59], %79 {strides = array<i32>} : memref<1x1x6x2x128xf32, #tpu.memory_space<vmem>>, vector<1x1x1x2x128xf32>,
    %c0_60 = arith.constant 0 : index
    %c0_61 = arith.constant 0 : index
    %c3 = arith.constant 3 : index
    %c0_62 = arith.constant 0 : index
    %c0_63 = arith.constant 0 : index
    %80 = vector.load %arg7[%c0_60, %c0_61, %c3, %c0_62, %c0_63] : memref<1x1x6x2x128xf32, #tpu.memory_space<vmem>>, vector<1x1x1x2x128xf32>
    %81 = vector.shape_cast %80 : vector<1x1x1x2x128xf32> to vector<2x128xf32>
    %82 = arith.addf %81, %59 : vector<2x128xf32>
    %c0_64 = arith.constant 0 : index
    %c0_65 = arith.constant 0 : index
    %c3_66 = arith.constant 3 : index
    %c0_67 = arith.constant 0 : index
    %c0_68 = arith.constant 0 : index
    %83 = vector.load %arg7[%c0_64, %c0_65, %c3_66, %c0_67, %c0_68] : memref<1x1x6x2x128xf32, #tpu.memory_space<vmem>>, vector<1x1x1x2x128xf32>
    %84 = vector.shape_cast %83 : vector<1x1x1x2x128xf32> to vector<2x128xf32>
    %85 = vector.shape_cast %82 : vector<2x128xf32> to vector<1x1x1x2x128xf32>
    tpu.vector_store %arg7[%c0_64, %c0_65, %c3_66, %c0_67, %c0_68], %85 {strides = array<i32>} : memref<1x1x6x2x128xf32, #tpu.memory_space<vmem>>, vector<1x1x1x2x128xf32>,
    %c0_69 = arith.constant 0 : index
    %c0_70 = arith.constant 0 : index
    %c4 = arith.constant 4 : index
    %c0_71 = arith.constant 0 : index
    %c0_72 = arith.constant 0 : index
    %86 = vector.load %arg7[%c0_69, %c0_70, %c4, %c0_71, %c0_72] : memref<1x1x6x2x128xf32, #tpu.memory_space<vmem>>, vector<1x1x1x2x128xf32>
    %87 = vector.shape_cast %86 : vector<1x1x1x2x128xf32> to vector<2x128xf32>
    %88 = arith.addf %87, %60 : vector<2x128xf32>
    %c0_73 = arith.constant 0 : index
    %c0_74 = arith.constant 0 : index
    %c4_75 = arith.constant 4 : index
    %c0_76 = arith.constant 0 : index
    %c0_77 = arith.constant 0 : index
    %89 = vector.load %arg7[%c0_73, %c0_74, %c4_75, %c0_76, %c0_77] : memref<1x1x6x2x128xf32, #tpu.memory_space<vmem>>, vector<1x1x1x2x128xf32>
    %90 = vector.shape_cast %89 : vector<1x1x1x2x128xf32> to vector<2x128xf32>
    %91 = vector.shape_cast %88 : vector<2x128xf32> to vector<1x1x1x2x128xf32>
    tpu.vector_store %arg7[%c0_73, %c0_74, %c4_75, %c0_76, %c0_77], %91 {strides = array<i32>} : memref<1x1x6x2x128xf32, #tpu.memory_space<vmem>>, vector<1x1x1x2x128xf32>,
    %c0_78 = arith.constant 0 : index
    %c0_79 = arith.constant 0 : index
    %c5 = arith.constant 5 : index
    %c0_80 = arith.constant 0 : index
    %c0_81 = arith.constant 0 : index
    %92 = vector.load %arg7[%c0_78, %c0_79, %c5, %c0_80, %c0_81] : memref<1x1x6x2x128xf32, #tpu.memory_space<vmem>>, vector<1x1x1x2x128xf32>
    %93 = vector.shape_cast %92 : vector<1x1x1x2x128xf32> to vector<2x128xf32>
    %94 = arith.addf %93, %61 : vector<2x128xf32>
    %c0_82 = arith.constant 0 : index
    %c0_83 = arith.constant 0 : index
    %c5_84 = arith.constant 5 : index
    %c0_85 = arith.constant 0 : index
    %c0_86 = arith.constant 0 : index
    %95 = vector.load %arg7[%c0_82, %c0_83, %c5_84, %c0_85, %c0_86] : memref<1x1x6x2x128xf32, #tpu.memory_space<vmem>>, vector<1x1x1x2x128xf32>
    %96 = vector.shape_cast %95 : vector<1x1x1x2x128xf32> to vector<2x128xf32>
    %97 = vector.shape_cast %94 : vector<2x128xf32> to vector<1x1x1x2x128xf32>
    tpu.vector_store %arg7[%c0_82, %c0_83, %c5_84, %c0_85, %c0_86], %97 {strides = array<i32>} : memref<1x1x6x2x128xf32, #tpu.memory_space<vmem>>, vector<1x1x1x2x128xf32>,
    return
  }
  func.func @transform_0(%arg0: i32, %arg1: i32, %arg2: i32) -> i32 {
    %c0_i32 = arith.constant 0 : i32
    %c0_i32_0 = arith.constant 0 : i32
    return %c0_i32 : i32
  }
  func.func @transform_1(%arg0: i32, %arg1: i32, %arg2: i32) -> (i32, i32, i32, i32) {
    %c1_i32 = arith.constant 1 : i32
    %0 = arith.muli %arg1, %c1_i32 : i32
    %1 = arith.addi %0, %arg2 : i32
    %c0_i32 = arith.constant 0 : i32
    %2 = arith.minsi %1, %c0_i32 : i32
    %c0_i32_0 = arith.constant 0 : i32
    %c0_i32_1 = arith.constant 0 : i32
    %c0_i32_2 = arith.constant 0 : i32
    return %arg0, %c0_i32_0, %2, %c0_i32_1 : i32, i32, i32, i32
  }
  func.func @transform_2(%arg0: i32, %arg1: i32, %arg2: i32) -> (i32, i32, i32, i32) {
    %c1_i32 = arith.constant 1 : i32
    %0 = arith.muli %arg1, %c1_i32 : i32
    %1 = arith.addi %0, %arg2 : i32
    %c0_i32 = arith.constant 0 : i32
    %2 = arith.minsi %1, %c0_i32 : i32
    %c0_i32_0 = arith.constant 0 : i32
    %c0_i32_1 = arith.constant 0 : i32
    %c0_i32_2 = arith.constant 0 : i32
    return %arg0, %c0_i32_0, %2, %c0_i32_1 : i32, i32, i32, i32
  }
  func.func @transform_3(%arg0: i32, %arg1: i32, %arg2: i32) -> (i32, i32, i32) {
    %c1_i32 = arith.constant 1 : i32
    %0 = arith.muli %arg1, %c1_i32 : i32
    %1 = arith.addi %0, %arg2 : i32
    %c0_i32 = arith.constant 0 : i32
    %2 = arith.minsi %1, %c0_i32 : i32
    %c0_i32_0 = arith.constant 0 : i32
    %c0_i32_1 = arith.constant 0 : i32
    %c0_i32_2 = arith.constant 0 : i32
    return %c0_i32_0, %2, %c0_i32_1 : i32, i32, i32
  }
  func.func @transform_4(%arg0: i32, %arg1: i32, %arg2: i32) -> (i32, i32, i32, i32, i32) {
    %c0_i32 = arith.constant 0 : i32
    %c0_i32_0 = arith.constant 0 : i32
    %c0_i32_1 = arith.constant 0 : i32
    %c0_i32_2 = arith.constant 0 : i32
    return %arg0, %arg1, %c0_i32, %c0_i32_0, %c0_i32_1 : i32, i32, i32, i32, i32
  }
}

</mosaic_0001>

<llo_original>
// kernel: tpu_custom_call.1
$region0: #{tpu_custom_call.1}
  #allocation0 [shape = 'u32[]', space=smem, size = 0x4, offset = 0x4, fixed_abs, tag = 'smem constant byte address 0x4 - core index']
  #allocation1 [shape = 'u32[144,128]{1,0:T(1,128)}', space=vmem, size = 0x12000, scoped, tag = 'internal scratch']
  #allocation2 [shape = 'f32[1]{0:T(128)S(6)}', space=smem, size = 0x200, scoped, tag = 'scoped memory for tpu_custom_call.1']
  %s0 = inlined_call_operand.<no memory space> [shape: f32[1], index: 0, kind: input, shape index: {}]
  %s1 = inlined_call_operand.hbm [shape: f32[2,3,2,128], index: 1, kind: input, shape index: {}]
  %s2 = inlined_call_operand.hbm [shape: f32[2,3,2,128], index: 2, kind: input, shape index: {}]
  %s3 = inlined_call_operand.vmem [shape: f32[1,2,128], index: 3, kind: input, shape index: {}]
  %s4 = inlined_call_operand.hbm [shape: f32[2,1,6,2,128], index: 4, kind: output, shape index: {}]
  %s5 = sld [smem:[#allocation0]]
  $region61: #{tpu_custom_call.1} parent=0
    _
  %s7 = ssub.s32 1, %s5
  %s8 = scalar_select 0, %s7, %s5
  %9 = sst [smem:[#allocation2]] %s0
  $region1: #{tpu_custom_call.1} parent=0
    #allocation3 [shape = 'u8[6144]{0}', space=vmem, size = 0x1800, scoped, tag = 'input window, operand 1']
    #allocation4 [shape = 's32[2]{0}', space=sflag, size = 0x8, scoped, tag = 'scoped memory for tpu_custom_call.1']
    #allocation5 [shape = 's32[2]{0}', space=sflag, size = 0x8, scoped, tag = 'scoped memory for tpu_custom_call.1']
    #allocation6 [shape = 'u8[4096]{0}', space=vmem, size = 0x1000, scoped, tag = 'input window, operand 2']
    #allocation7 [shape = 's32[2]{0}', space=sflag, size = 0x8, scoped, tag = 'scoped memory for tpu_custom_call.1']
    #allocation8 [shape = 'u8[12288]{0}', space=vmem, size = 0x3000, scoped, tag = 'output window, operand 0']
    %10 = vsyncpa [#allocation4], 0
    %s11 = scalar_lea.sflag [#allocation4], 1
    %12 = vsyncpa %s11, 0
    %13 = vsyncpa [#allocation7], 0
    %s14 = scalar_lea.sflag [#allocation7], 1
    %15 = vsyncpa %s14, 0
    %16 = vsyncpa [#allocation5], 0
    %s17 = scalar_lea.sflag [#allocation5], 1
    %18 = vsyncpa %s17, 0
    loop: start=0, step=1, limit=4
    $region2: #{tpu_custom_call.1} parent=1 // loop_pre_header
      _
    $region3: #{tpu_custom_call.1} parent=1 // loop_header
      %s20 = sphi 0, %s24
      %p21 = scmp.ge.s32.totalorder %s20, 4
      %s27 = sphi 0, %s46
      %s28 = sphi 0, %s42
      %s29 = sphi 0, %s38
      %s30 = sphi 0, %s27
      %s31 = sphi 0, %s28
      %s32 = sphi 0, %s29
      %s33 = sphi 0, %s30
      %s34 = sphi 0, %s31
      %s35 = sphi 0, %s32
      %s47 = sphi 0, %s47
      %s49 = sphi 0, %s47
      %s50 = sphi 0, %s49
      %s64 = sphi 0, %s50
      %s78 = sphi 0, %s80
      %s81 = sphi 0, %s78
      %s82 = sphi 0, %s81
      %s98 = sphi 0, %s82
      %s112 = sphi 0, %s114
      %s115 = sphi 0, %s112
      %s116 = sphi 0, %s115
      %s132 = sphi 0, %s116
      %s144 = sphi 0, %s146
      %s147 = sphi 0, %s144
      %s148 = sphi 0, %s147
      %s164 = sphi 0, %s148
      %s172 = sphi 0, %s174
      %s175 = sphi 0, %s172
      %s176 = sphi 0, %s175
      %s192 = sphi 0, %s176
    $region4: #{tpu_custom_call.1} parent=1 // loop_header_branch
      %23 = sbr.rel (%p21) target = $region8
    $region5: #{tpu_custom_call.1} parent=1 // loop_body
      %s25 = ssub.s32 %s20, 1
      %s26 = ssub.s32 %s20, 2
      %s36 = sadd.s32 1, %s29
      %p37 = scmp.ge.s32.totalorder %s36, 1
      %s38 = scalar_select %p37, 0, %s36
      %s39 = sadd.s32 1, %s28
      %s40 = scalar_select %p37, %s39, %s28
      %p41 = scmp.ge.s32.totalorder %s40, 1
      %s42 = scalar_select %p41, 0, %s40
      %s43 = sadd.s32 1, %s27
      %s44 = scalar_select %p41, %s43, %s27
      %p45 = scmp.ge.s32.totalorder %s44, 2
      %s46 = scalar_select %p45, 0, %s44
      %s48 = sadd.s32 %s47, 1
      %p51 = scmp.eq.s32.totalorder %s20, 1
      %p52 = scmp.ne.s32.totalorder %s47, %s49
      %p53 = scmp.eq.s32.totalorder %s20, 0
      %p54 = por %p52, %p53
      %p55 = scmp.ne.s32.totalorder %s47, %s49
      %p56 = scmp.eq.s32.totalorder %s25, 1
      %p57 = por %p55, %p56
      %p58 = scmp.ne.s32.totalorder %s49, %s50
      %p59 = scmp.eq.s32.totalorder %s25, 0
      %p60 = por %p58, %p59
      %p61 = scmp.ne.s32.totalorder %s49, %s50
      %p62 = scmp.eq.s32.totalorder %s26, 1
      %p63 = por %p61, %p62
      %p65 = scmp.ne.s32.totalorder %s50, %s64
      %p66 = scmp.eq.s32.totalorder %s26, 0
      %p67 = por %p65, %p66
      %s68 = sadd.s32 %s28, %s29
      %p69 = scmp.lt.s32.totalorder %s68, 0
      %s70 = scalar_select %p69, %s68, 0
      %s71 = sadd.s32 %s42, %s38
      %p72 = scmp.lt.s32.totalorder %s71, 0
      %s73 = scalar_select %p72, %s71, 0
      %s74 = ssub.s32 %s27, %s46
      %s75 = ssub.s32 %s70, %s73
      %s76 = sor.u32 %s74, %s75
      %p77 = scmp.eq.s32.totalorder %s76, 0
      %s79 = sadd.s32 %s78, 1
      %s80 = scalar_select %p77, %s78, %s79
      %p83 = pneg %p77
      %p84 = scmp.eq.s32.totalorder %s20, 1
      %p85 = por %p83, %p84
      %p86 = scmp.ne.s32.totalorder %s78, %s81
      %p87 = scmp.eq.s32.totalorder %s20, 0
      %p88 = por %p86, %p87
      %p89 = scmp.ne.s32.totalorder %s78, %s81
      %p90 = scmp.eq.s32.totalorder %s25, 1
      %p91 = por %p89, %p90
      %p92 = scmp.ne.s32.totalorder %s81, %s82
      %p93 = scmp.eq.s32.totalorder %s25, 0
      %p94 = por %p92, %p93
      %p95 = scmp.ne.s32.totalorder %s81, %s82
      %p96 = scmp.eq.s32.totalorder %s26, 1
      %p97 = por %p95, %p96
      %p99 = scmp.ne.s32.totalorder %s82, %s98
      %p100 = scmp.eq.s32.totalorder %s26, 0
      %p101 = por %p99, %p100
      %s102 = sadd.s32 %s28, %s29
      %p103 = scmp.lt.s32.totalorder %s102, 0
      %s104 = scalar_select %p103, %s102, 0
      %s105 = sadd.s32 %s42, %s38
      %p106 = scmp.lt.s32.totalorder %s105, 0
      %s107 = scalar_select %p106, %s105, 0
      %s108 = ssub.s32 %s27, %s46
      %s109 = ssub.s32 %s104, %s107
      %s110 = sor.u32 %s108, %s109
      %p111 = scmp.eq.s32.totalorder %s110, 0
      %s113 = sadd.s32 %s112, 1
      %s114 = scalar_select %p111, %s112, %s113
      %p117 = pneg %p111
      %p118 = scmp.eq.s32.totalorder %s20, 1
      %p119 = por %p117, %p118
      %p120 = scmp.ne.s32.totalorder %s112, %s115
      %p121 = scmp.eq.s32.totalorder %s20, 0
      %p122 = por %p120, %p121
      %p123 = scmp.ne.s32.totalorder %s112, %s115
      %p124 = scmp.eq.s32.totalorder %s25, 1
      %p125 = por %p123, %p124
      %p126 = scmp.ne.s32.totalorder %s115, %s116
      %p127 = scmp.eq.s32.totalorder %s25, 0
      %p128 = por %p126, %p127
      %p129 = scmp.ne.s32.totalorder %s115, %s116
      %p130 = scmp.eq.s32.totalorder %s26, 1
      %p131 = por %p129, %p130
      %p133 = scmp.ne.s32.totalorder %s116, %s132
      %p134 = scmp.eq.s32.totalorder %s26, 0
      %p135 = por %p133, %p134
      %s136 = sadd.s32 %s28, %s29
      %p137 = scmp.lt.s32.totalorder %s136, 0
      %s138 = scalar_select %p137, %s136, 0
      %s139 = sadd.s32 %s42, %s38
      %p140 = scmp.lt.s32.totalorder %s139, 0
      %s141 = scalar_select %p140, %s139, 0
      %s142 = ssub.s32 %s138, %s141
      %p143 = scmp.eq.s32.totalorder %s142, 0
      %s145 = sadd.s32 %s144, 1
      %s146 = scalar_select %p143, %s144, %s145
      %p149 = pneg %p143
      %p150 = scmp.eq.s32.totalorder %s20, 1
      %p151 = por %p149, %p150
      %p152 = scmp.ne.s32.totalorder %s144, %s147
      %p153 = scmp.eq.s32.totalorder %s20, 0
      %p154 = por %p152, %p153
      %p155 = scmp.ne.s32.totalorder %s144, %s147
      %p156 = scmp.eq.s32.totalorder %s25, 1
      %p157 = por %p155, %p156
      %p158 = scmp.ne.s32.totalorder %s147, %s148
      %p159 = scmp.eq.s32.totalorder %s25, 0
      %p160 = por %p158, %p159
      %p161 = scmp.ne.s32.totalorder %s147, %s148
      %p162 = scmp.eq.s32.totalorder %s26, 1
      %p163 = por %p161, %p162
      %p165 = scmp.ne.s32.totalorder %s148, %s164
      %p166 = scmp.eq.s32.totalorder %s26, 0
      %p167 = por %p165, %p166
      %s168 = ssub.s32 %s27, %s46
      %s169 = ssub.s32 %s28, %s42
      %s170 = sor.u32 %s168, %s169
      %p171 = scmp.eq.s32.totalorder %s170, 0
      %s173 = sadd.s32 %s172, 1
      %s174 = scalar_select %p171, %s172, %s173
      %p177 = pneg %p171
      %p178 = scmp.eq.s32.totalorder %s20, 1
      %p179 = por %p177, %p178
      %p180 = scmp.ne.s32.totalorder %s172, %s175
      %p181 = scmp.eq.s32.totalorder %s20, 0
      %p182 = por %p180, %p181
      %p183 = scmp.ne.s32.totalorder %s172, %s175
      %p184 = scmp.eq.s32.totalorder %s25, 1
      %p185 = por %p183, %p184
      %p186 = scmp.ne.s32.totalorder %s175, %s176
      %p187 = scmp.eq.s32.totalorder %s25, 0
      %p188 = por %p186, %p187
      %p189 = scmp.ne.s32.totalorder %s175, %s176
      %p190 = scmp.eq.s32.totalorder %s26, 1
      %p191 = por %p189, %p190
      %p193 = scmp.ne.s32.totalorder %s176, %s192
      %p194 = scmp.eq.s32.totalorder %s26, 0
      %p195 = por %p193, %p194
      %p196 = scmp.le.s32.totalorder 1, %s20
      %p197 = scmp.lt.s32.totalorder %s20, 3
      %p198 = pnand %p196, %p197
      %p199 = pneg %p198
      // Predicated region
      $region9: #{tpu_custom_call.1} parent=5 // pred_check
        _
      $region10: #{tpu_custom_call.1} parent=5 // pred_check_branch
        %201 = sbr.rel (%p198) target = $region12
      $region11: #{tpu_custom_call.1} parent=5 // pred_region
        %s202 = ssub.s32 %s20, 1
        // Predicated region
        $region13: #{tpu_custom_call.1} parent=11 // pred_check
          %p203 = pneg %p60
        $region14: #{tpu_custom_call.1} parent=11 // pred_check_branch
          %205 = sbr.rel (%p203) target = $region16
        $region15: #{tpu_custom_call.1} parent=11 // pred_region
          _
        $region16: #{tpu_custom_call.1} parent=11 // pred_fallthru
          _
        // Predicated region
        $region17: #{tpu_custom_call.1} parent=11 // pred_check
          %p206 = pneg %p160
        $region18: #{tpu_custom_call.1} parent=11 // pred_check_branch
          %208 = sbr.rel (%p206) target = $region20
        $region19: #{tpu_custom_call.1} parent=11 // pred_region
          %s209 = sadd.s32 %s31, %s32
          %p210 = scmp.lt.s32.totalorder %s209, 0
          %s211 = scalar_select %p210, %s209, 0
          %p212 = scmp.lt.s32.totalorder %s211, 0
          %s213 = scalar_select %p212, %s211, 0
          %s214 = smul.addr %s213, 2
          %s215 = scalar_lea.vmem %s3, %s214
          %s216 = sadd.s32 %s31, %s32
          %p217 = scmp.lt.s32.totalorder %s216, 0
          %s218 = scalar_select %p217, %s216, 0
        $region20: #{tpu_custom_call.1} parent=11 // pred_fallthru
          _
      $region12: #{tpu_custom_call.1} parent=5 // pred_fallthru
        _
      %p219 = scmp.lt.s32.totalorder %s20, 2
      // Predicated region
      $region21: #{tpu_custom_call.1} parent=5 // pred_check
        %p220 = pneg %p219
      $region22: #{tpu_custom_call.1} parent=5 // pred_check_branch
        %222 = sbr.rel (%p220) target = $region24
      $region23: #{tpu_custom_call.1} parent=5 // pred_region
        // Predicated region
        $region25: #{tpu_custom_call.1} parent=23 // pred_check
          %p223 = pneg %p88
        $region26: #{tpu_custom_call.1} parent=23 // pred_check_branch
          %225 = sbr.rel (%p223) target = $region28
        $region27: #{tpu_custom_call.1} parent=23 // pred_region
          %s226 = sand.u32 %s78, 1
          %s227 = scalar_lea.sflag [#allocation4], %s226
          %s228 = sand.u32 %s78, 1
          %s229 = smul.addr %s228, 6
          %s230 = scalar_lea.vmem [#allocation3], %s229
          %s231 = sadd.s32 %s28, %s29
          %p232 = scmp.lt.s32.totalorder %s231, 0
          %s233 = scalar_select %p232, %s231, 0
          %s235 = ssub.s32 96, 96
          %236 = vsyncadd %s227, %s235
          %s237 = smul.addr %s27, 3
          %s238 = sadd.s32 %s233, %s237
          %s239 = smul.addr %s238, 32
          %s240 = scalar_lea.hbm %s1, %s239
          %s241 = sshll.u32 %s230, 4
          %s242 = int_to_ptr.vmem [resolvable:$true] %s241
          %247 = dma.hbm_to_vmem [thread:$0]  %s240, 96, %s242, %s227, 32, 32, 2
        $region28: #{tpu_custom_call.1} parent=23 // pred_fallthru
          _
        // Predicated region
        $region29: #{tpu_custom_call.1} parent=23 // pred_check
          %p248 = pneg %p122
        $region30: #{tpu_custom_call.1} parent=23 // pred_check_branch
          %250 = sbr.rel (%p248) target = $region32
        $region31: #{tpu_custom_call.1} parent=23 // pred_region
          %s251 = sand.u32 %s112, 1
          %s252 = scalar_lea.sflag [#allocation7], %s251
          %s253 = sand.u32 %s112, 1
          %s254 = smul.addr %s253, 4
          %s255 = scalar_lea.vmem [#allocation6], %s254
          %s256 = sadd.s32 %s28, %s29
          %p257 = scmp.lt.s32.totalorder %s256, 0
          %s258 = scalar_select %p257, %s256, 0
          %s260 = ssub.s32 64, 64
          %261 = vsyncadd %s252, %s260
          %s262 = smul.addr %s27, 3
          %s263 = sadd.s32 %s258, %s262
          %s264 = smul.addr %s263, 32
          %s265 = scalar_lea.hbm %s2, %s264
          %s266 = sshll.u32 %s255, 4
          %s267 = int_to_ptr.vmem [resolvable:$true] %s266
          %272 = dma.hbm_to_vmem [thread:$0]  %s265, 64, %s267, %s252, 32, 32, 2
        $region32: #{tpu_custom_call.1} parent=23 // pred_fallthru
          _
      $region24: #{tpu_custom_call.1} parent=5 // pred_fallthru
        _
      %p273 = scmp.le.s32.totalorder 1, %s20
      %p274 = scmp.lt.s32.totalorder %s20, 3
      %p275 = pnand %p273, %p274
      %p276 = pneg %p275
      // Predicated region
      $region33: #{tpu_custom_call.1} parent=5 // pred_check
        _
      $region34: #{tpu_custom_call.1} parent=5 // pred_check_branch
        %278 = sbr.rel (%p275) target = $region36
      $region35: #{tpu_custom_call.1} parent=5 // pred_region
        %s279 = ssub.s32 %s20, 1
        %s280 = sand.u32 %s81, 1
        %s281 = scalar_lea.sflag [#allocation4], %s280
        %s282 = sand.u32 %s81, 1
        %s283 = smul.addr %s282, 6
        %s284 = scalar_lea.vmem [#allocation3], %s283
        // Predicated region
        $region37: #{tpu_custom_call.1} parent=35 // pred_check
          %p285 = pneg %p94
        $region38: #{tpu_custom_call.1} parent=35 // pred_check_branch
          %287 = sbr.rel (%p285) target = $region40
        $region39: #{tpu_custom_call.1} parent=35 // pred_region
          %288 = dma.done %s281, 96
        $region40: #{tpu_custom_call.1} parent=35 // pred_fallthru
          _
        %s289 = sand.u32 %s115, 1
        %s290 = scalar_lea.sflag [#allocation7], %s289
        %s291 = sand.u32 %s115, 1
        %s292 = smul.addr %s291, 4
        %s293 = scalar_lea.vmem [#allocation6], %s292
        // Predicated region
        $region41: #{tpu_custom_call.1} parent=35 // pred_check
          %p294 = pneg %p128
        $region42: #{tpu_custom_call.1} parent=35 // pred_check_branch
          %296 = sbr.rel (%p294) target = $region44
        $region43: #{tpu_custom_call.1} parent=35 // pred_region
          %297 = dma.done %s290, 64
        $region44: #{tpu_custom_call.1} parent=35 // pred_fallthru
          _
        %p298 = pneg %p60
        %p299 = pneg %p57
        %s300 = sand.u32 %s81, 1
        %s301 = scalar_lea.sflag [#allocation4], %s300
        %s302 = sand.u32 %s81, 1
        %s303 = smul.addr %s302, 6
        %s304 = scalar_lea.vmem [#allocation3], %s303
        %p305 = pneg %p94
        %p306 = pneg %p91
        %s307 = sand.u32 %s115, 1
        %s308 = scalar_lea.sflag [#allocation7], %s307
        %s309 = sand.u32 %s115, 1
        %s310 = smul.addr %s309, 4
        %s311 = scalar_lea.vmem [#allocation6], %s310
        %p312 = pneg %p128
        %p313 = pneg %p125
        %s314 = sadd.s32 %s31, %s32
        %p315 = scmp.lt.s32.totalorder %s314, 0
        %s316 = scalar_select %p315, %s314, 0
        %p317 = scmp.lt.s32.totalorder %s316, 0
        %s318 = scalar_select %p317, %s316, 0
        %s319 = smul.addr %s318, 2
        %s320 = scalar_lea.vmem %s3, %s319
        %p321 = pneg %p160
        %p322 = pneg %p157
        %p323 = pneg %p188
        %p324 = pneg %p185
        %s325 = sand.u32 %s175, 1
        %s326 = scalar_lea.sflag [#allocation5], %s325
        %s327 = sand.u32 %s175, 1
        %s328 = smul.addr %s327, 12
        %s329 = scalar_lea.vmem [#allocation8], %s328
        %s330 = sadd.s32 %s31, %s32
        %p331 = scmp.lt.s32.totalorder %s330, 0
        %s332 = scalar_select %p331, %s330, 0
        %s333 = sadd.s32 %s31, %s32
        %p334 = scmp.lt.s32.totalorder %s333, 0
        %s335 = scalar_select %p334, %s333, 0
        %s336 = sadd.s32 %s31, %s32
        %p337 = scmp.lt.s32.totalorder %s336, 0
        %s338 = scalar_select %p337, %s336, 0
        %p339 = scmp.lt.s32.totalorder %s338, 0
        %s340 = scalar_select %p339, %s338, 0
        %s341 = smul.addr %s340, 2
        %s342 = scalar_lea.vmem %s3, %s341
        %s343 = sadd.s32 %s31, %s32
        %p344 = scmp.lt.s32.totalorder %s343, 0
        %s345 = scalar_select %p344, %s343, 0
        %p346 = scmp.eq.s32.totalorder %s32, 0
        // Predicated region
        $region45: #{tpu_custom_call.1} parent=35 // pred_check
          %p347 = pneg %p346
        $region46: #{tpu_custom_call.1} parent=35 // pred_check_branch
          %349 = sbr.rel (%p347) target = $region48
        $region47: #{tpu_custom_call.1} parent=35 // pred_region
          %350 = vst [vmem:[%s329] sm:$0x3] 0.0
          %351 = vst [vmem:[%s329 + $0x2] sm:$0x3] 0.0
          %352 = vst [vmem:[%s329 + $0x4] sm:$0x3] 0.0
          %353 = vst [vmem:[%s329 + $0x6] sm:$0x3] 0.0
          %354 = vst [vmem:[%s329 + $0x8] sm:$0x3] 0.0
          %355 = vst [vmem:[%s329 + $0xa] sm:$0x3] 0.0
        $region48: #{tpu_custom_call.1} parent=35 // pred_fallthru
          _
        %s356 = sld [smem:[#allocation2]]
        %v357 = vld [vmem:[%s342] sm:$0x3]
        %v358 = vstv %s356
        %vm359 = vcmp.gt.f32.partialorder %v357, %v358
        %v360 = vld [vmem:[%s284] sm:$0x3]
        %s361 = scalar_lea.vmem %s284, 2 [#allocation3]
        %v362 = vld [vmem:[%s361] sm:$0x3]
        %s363 = scalar_lea.vmem %s284, 4 [#allocation3]
        %v364 = vld [vmem:[%s363] sm:$0x3]
        %v365 = vmax.f32 %v360, %v362
        %v366 = vmax.f32 %v365, %v364
        %v367 = vsub.f32 %v360, %v366
        %v368 = vmul.f32 %v367, 1.442695
        %v369 = vpow.pop %v368
        %v370 = vsub.f32 %v362, %v366
        %v371 = vmul.f32 %v370, 1.442695
        %v372 = vpow.pop %v371
        %v373 = vsub.f32 %v364, %v366
        %v374 = vmul.f32 %v373, 1.442695
        %v375 = vpow.pop %v374
        %v376 = vadd.f32 %v369, %v372
        %v377 = vadd.f32 %v376, %v375
        %v378 = vmul.f32 %v377, 0.5
        %vm379 = vcmp.gt.f32.partialorder %v369, %v378
        %vm380 = vmand %vm359, %vm379
        %v381 = vsel %vm380, 1, 0
        %v382 = vcvt.s32.f32 %v381
        %v383 = vld [vmem:[%s293] sm:$0x3]
        %vm384 = vcmp.gt.f32.partialorder %v383, 0.0
        %vm385 = vmand %vm359, %vm384
        %v386 = vsel %vm385, 1, 0
        %v387 = vcvt.s32.f32 %v386
        %v388 = vmul.f32 %v382, %v387
        %v389 = vadd.f32 %v388, 0.0
        %v390 = vadd.f32 %v382, 0.0
        %v391 = vadd.f32 %v387, 0.0
        %vm392 = vcmp.gt.f32.partialorder %v372, %v378
        %vm393 = vmand %vm359, %vm392
        %v394 = vsel %vm393, 1, 0
        %v395 = vcvt.s32.f32 %v394
        %s396 = scalar_lea.vmem %s293, 2 [#allocation6]
        %v397 = vld [vmem:[%s396] sm:$0x3]
        %vm398 = vcmp.gt.f32.partialorder %v397, 0.0
        %vm399 = vmand %vm359, %vm398
        %v400 = vsel %vm399, 1, 0
        %v401 = vcvt.s32.f32 %v400
        %v402 = vmul.f32 %v395, %v401
        %v403 = vadd.f32 %v402, 0.0
        %v404 = vadd.f32 %v395, 0.0
        %v405 = vadd.f32 %v401, 0.0
        %v406 = vld [vmem:[%s329] sm:$0x3]
        %v407 = vadd.f32 %v406, %v389
        %408 = vst [vmem:[%s329] sm:$0x3] %v407
        %s409 = scalar_lea.vmem %s329, 2 [#allocation8]
        %v410 = vld [vmem:[%s409] sm:$0x3]
        %v411 = vadd.f32 %v410, %v390
        %412 = vst [vmem:[%s409] sm:$0x3] %v411
        %s413 = scalar_lea.vmem %s329, 4 [#allocation8]
        %v414 = vld [vmem:[%s413] sm:$0x3]
        %v415 = vadd.f32 %v414, %v391
        %416 = vst [vmem:[%s413] sm:$0x3] %v415
        %s417 = scalar_lea.vmem %s329, 6 [#allocation8]
        %v418 = vld [vmem:[%s417] sm:$0x3]
        %v419 = vadd.f32 %v418, %v403
        %420 = vst [vmem:[%s417] sm:$0x3] %v419
        %s421 = scalar_lea.vmem %s329, 8 [#allocation8]
        %v422 = vld [vmem:[%s421] sm:$0x3]
        %v423 = vadd.f32 %v422, %v404
        %424 = vst [vmem:[%s421] sm:$0x3] %v423
        %s425 = scalar_lea.vmem %s329, 10 [#allocation8]
        %v426 = vld [vmem:[%s425] sm:$0x3]
        %v427 = vadd.f32 %v426, %v405
        %428 = vst [vmem:[%s425] sm:$0x3] %v427
        %s429 = sand.u32 %s175, 1
        %s430 = scalar_lea.sflag [#allocation5], %s429
        %s431 = sand.u32 %s175, 1
        %s432 = smul.addr %s431, 12
        %s433 = scalar_lea.vmem [#allocation8], %s432
        // Predicated region
        $region49: #{tpu_custom_call.1} parent=35 // pred_check
          %p434 = pneg %p185
        $region50: #{tpu_custom_call.1} parent=35 // pred_check_branch
          %436 = sbr.rel (%p434) target = $region52
        $region51: #{tpu_custom_call.1} parent=35 // pred_region
          %s438 = ssub.s32 192, 192
          %439 = vsyncadd %s430, %s438
          %s440 = smul.addr %s31, 6
          %s441 = smul.addr %s30, 6
          %s442 = sadd.s32 %s440, %s441
          %s443 = smul.addr %s442, 32
          %s444 = scalar_lea.hbm %s4, %s443
          %s445 = sshll.u32 %s433, 4
          %s446 = int_to_ptr.vmem [resolvable:$true] %s445
          %451 = dma.vmem_to_hbm [thread:$0]  %s446, 192, %s444, %s430, 32, 32, 2
        $region52: #{tpu_custom_call.1} parent=35 // pred_fallthru
          _
      $region36: #{tpu_custom_call.1} parent=5 // pred_fallthru
        _
      %p452 = scmp.le.s32.totalorder 2, %s20
      // Predicated region
      $region53: #{tpu_custom_call.1} parent=5 // pred_check
        %p453 = pneg %p452
      $region54: #{tpu_custom_call.1} parent=5 // pred_check_branch
        %455 = sbr.rel (%p453) target = $region56
      $region55: #{tpu_custom_call.1} parent=5 // pred_region
        %s456 = ssub.s32 %s20, 2
        // Predicated region
        $region57: #{tpu_custom_call.1} parent=55 // pred_check
          %p457 = pneg %p191
        $region58: #{tpu_custom_call.1} parent=55 // pred_check_branch
          %459 = sbr.rel (%p457) target = $region60
        $region59: #{tpu_custom_call.1} parent=55 // pred_region
          %s460 = sand.u32 %s176, 1
          %s461 = scalar_lea.sflag [#allocation5], %s460
          %s462 = sand.u32 %s176, 1
          %s463 = smul.addr %s462, 12
          %s464 = scalar_lea.vmem [#allocation8], %s463
          %465 = dma.done %s461, 192
        $region60: #{tpu_custom_call.1} parent=55 // pred_fallthru
          _
      $region56: #{tpu_custom_call.1} parent=5 // pred_fallthru
        _
    $region6: #{tpu_custom_call.1} parent=1 // loop_footer
      %s24 = sadd.s32 1, %s20
    $region7: #{tpu_custom_call.1} parent=1 // loop_footer_branch
      %19 = sbr.rel target = $region3
    $region8: #{tpu_custom_call.1} parent=1 // loop_exit
      _
    %466 = vsyncpa [#allocation4], 1
    %s467 = scalar_lea.sflag [#allocation4], 1
    %468 = vsyncpa %s467, 1
    %469 = vsyncpa [#allocation7], 1
    %s470 = scalar_lea.sflag [#allocation7], 1
    %471 = vsyncpa %s470, 1
    %472 = vsyncpa [#allocation5], 1
    %s473 = scalar_lea.sflag [#allocation5], 1
    %474 = vsyncpa %s473, 1

</llo_original>
